<compile_context>
chip_gen: v5e
topology: v5e:2x2
jax: 0.10.0
libtpu: 0.0.40
codegen_flags: <defaults>
</compile_context>

<pallas_src>
import jax
import jax.numpy as jnp
from jax.experimental import pallas as pl
from jax.experimental.pallas import tpu as pltpu


def _hw_block_params():
    """Pick (block_bytes, vmem_limit_bytes) per TPU generation.

    v7x: 64 MiB VMEM but much faster HBM -> bigger blocks to amortize the
    ~0.35 us per-grid-step overhead (6 MiB x 4 buffers = 24 MiB, 40 MiB limit
    leaves headroom under the 64 MiB physical VMEM).
    v5e/v6e: 4 MiB blocks (roofline knee is just past 2 MiB); explicit 32 MiB
    limit since v5e's scoped default is only 16 MiB.
    """
    block_bytes = 4 * 1024 * 1024
    vmem_limit = 32 * 1024 * 1024
    try:
        vmem_cap = int(pltpu.get_tpu_info().vmem_capacity_bytes)
        if vmem_cap <= 64 * 1024 * 1024:  # v7x-class part
            block_bytes = 6 * 1024 * 1024
            vmem_limit = 40 * 1024 * 1024
    except Exception:
        pass  # conservative defaults are safe on every generation
    return block_bytes, vmem_limit


def _scale_exp_kernel(scale_ref, x_ref, o_ref):
    # scale_ref: (1,) f32 in SMEM; x_ref/o_ref: (block_rows, lanes) VMEM tiles.
    # f32 compute path everywhere (v5e has no bf16 VPU/EUP); kernel is HBM-bound
    # so a bf16 fast path would be neutral today.
    s = scale_ref[0]
    x = x_ref[...].astype(jnp.float32)
    o_ref[...] = jnp.exp(x * s).astype(o_ref.dtype)


def _scale_exp_2d(x2d, scale_arr):
    rows, lanes = x2d.shape
    dtype = x2d.dtype
    itemsize = jnp.dtype(dtype).itemsize
    block_bytes, vmem_limit = _hw_block_params()

    # Sublane alignment for the dtype's packing (f32 -> 8, bf16 -> 16, int8 -> 32).
    align = max(8, 32 // itemsize)
    target_rows = max(align, (block_bytes // (lanes * itemsize)) // align * align)

    if rows > align:
        # Cap block_rows at aligned ceil(rows/2) so the grid always has >= 2
        # "parallel" programs: on v7x this lets the parallel axis shard across
        # both TensorCores (use pltpu.CORE_PARALLEL if plain PARALLEL ever fails
        # to shard).  Costs < 1 us of extra step overhead on single-TC chips.
        half_rows = -(-rows // 2)
        half_rows_aligned = -(-half_rows // align) * align
        block_rows = min(target_rows, half_rows_aligned)
    else:
        block_rows = rows  # tiny slab: single full-extent block (always legal)

    grid = (pl.cdiv(rows, block_rows),)
    n_elems = rows * lanes

    return pl.pallas_call(
        _scale_exp_kernel,
        out_shape=jax.ShapeDtypeStruct((rows, lanes), dtype),
        grid_spec=pl.GridSpec(
            grid=grid,
            in_specs=[
                # Learned scalar: untiled, resident in SMEM for the whole grid
                # (same residency as scalar prefetch, zero per-step copies).
                pl.BlockSpec(memory_space=pltpu.MemorySpace.SMEM),
                pl.BlockSpec((block_rows, lanes), lambda i: (i, 0)),
            ],
            out_specs=pl.BlockSpec((block_rows, lanes), lambda i: (i, 0)),
        ),
        compiler_params=pltpu.CompilerParams(
            dimension_semantics=("parallel",),
            vmem_limit_bytes=vmem_limit,
        ),
        cost_estimate=pl.CostEstimate(
            flops=n_elems,
            transcendentals=n_elems,
            bytes_accessed=2 * n_elems * itemsize,
        ),
        # TODO(synk): add input_output_aliases={1: 0} when the caller can donate x
        # (saves the output HBM allocation, not DMA bytes).
    )(scale_arr, x2d)


def scale_exp(x, scale):
    """out = exp(x * scale); x: (N, C, H, W) float array, scale: learned scalar."""
    orig_shape = x.shape
    dtype = x.dtype
    n = x.size
    scale_arr = jnp.reshape(jnp.asarray(scale, dtype=jnp.float32), (1,))

    x_flat = jnp.reshape(x, (-1,))

    # Widest lane-dense last dim that divides n (NCHW sizes are almost always
    # multiples of 128) -> large contiguous DMAs, unmasked full-lane stores.
    lanes = 128
    for cand in (2048, 1024, 512, 256, 128):
        if n % cand == 0:
            lanes = cand
            break

    n_main = (n // lanes) * lanes
    if n_main == 0:
        # Fewer than 128 elements: not worth a kernel launch.
        return jnp.exp(x.astype(jnp.float32) * scale_arr[0]).astype(dtype)

    rows = n_main // lanes
    x_main = x_flat if n_main == n else x_flat[:n_main]
    out2d = _scale_exp_2d(jnp.reshape(x_main, (rows, lanes)), scale_arr)
    out_flat = jnp.reshape(out2d, (n_main,))

    if n_main != n:
        # Ragged tail (< lanes elements): plain jnp.exp on the tail instead of the
        # old full-array jnp.pad + out[:n] slice (which tripled HBM traffic).
        tail = x_flat[n_main:]
        out_tail = jnp.exp(tail.astype(jnp.float32) * scale_arr[0]).astype(dtype)
        out_flat = jnp.concatenate([out_flat, out_tail])

    return jnp.reshape(out_flat, orig_shape)


if __name__ == "__main__":
    key = jax.random.PRNGKey(0)
    # NCHW input, small shapes
    x = jax.random.normal(key, (2, 4, 16, 16), dtype=jnp.float32)

    # Deterministic parameter init, matching nn.Parameter(torch.tensor([1.0]))
    init_value = 1.0
    scale_param = jnp.array([init_value], dtype=jnp.float32)

    out = scale_exp(x, scale_param[0])
    out = jax.block_until_ready(out)

    # Correctness check against plain-JAX reference
    ref = jnp.exp(x * scale_param[0])
    assert out.shape == x.shape
    assert out.dtype == x.dtype
    assert jnp.allclose(out, ref, atol=1e-6, rtol=1e-6)

    print("KERNEL_OK")
</pallas_src>

<mosaic_0001>
module attributes {stable_mosaic.version = 11 : i64} {
  func.func @_scale_exp_kernel(%arg0: i32, %arg1: memref<1xf32, #tpu.memory_space<smem>>, %arg2: memref<1x2048xf32, #tpu.memory_space<vmem>>, %arg3: memref<1x2048xf32, #tpu.memory_space<vmem>>) attributes {dimension_semantics = [#tpu.dimension_semantics<parallel>], iteration_bounds = array<i64: 1>, scalar_prefetch = 0 : i64, scratch_operands = 0 : i64, tpu.core_type = #tpu.core_type<tc>, window_params = [{transform_indices = @transform_0, window_bounds = array<i64: 1>}, {transform_indices = @transform_1, window_bounds = array<i64: 1, 2048>}, {transform_indices = @transform_2, window_bounds = array<i64: 1, 2048>}]} {
    %c0 = arith.constant 0 : index
    %0 = memref.load %arg1[%c0] : memref<1xf32, #tpu.memory_space<smem>>
    %c0_0 = arith.constant 0 : index
    %c0_1 = arith.constant 0 : index
    %1 = vector.load %arg2[%c0_0, %c0_1] : memref<1x2048xf32, #tpu.memory_space<vmem>>, vector<1x2048xf32>
    %2 = vector.broadcast %0 : f32 to vector<1x2048xf32>
    %3 = arith.mulf %1, %2 : vector<1x2048xf32>
    %4 = math.exp %3 : vector<1x2048xf32>
    %c0_2 = arith.constant 0 : index
    %c0_3 = arith.constant 0 : index
    %5 = vector.load %arg3[%c0_2, %c0_3] : memref<1x2048xf32, #tpu.memory_space<vmem>>, vector<1x2048xf32>
    tpu.vector_store %arg3[%c0_2, %c0_3], %4 {strides = array<i32>} : memref<1x2048xf32, #tpu.memory_space<vmem>>, vector<1x2048xf32>,
    return
  }
  func.func @transform_0(%arg0: i32) -> i32 {
    %c0_i32 = arith.constant 0 : i32
    %c0_i32_0 = arith.constant 0 : i32
    return %c0_i32 : i32
  }
  func.func @transform_1(%arg0: i32) -> (i32, i32) {
    %c0_i32 = arith.constant 0 : i32
    %c0_i32_0 = arith.constant 0 : i32
    return %arg0, %c0_i32 : i32, i32
  }
  func.func @transform_2(%arg0: i32) -> (i32, i32) {
    %c0_i32 = arith.constant 0 : i32
    %c0_i32_0 = arith.constant 0 : i32
    return %arg0, %c0_i32 : i32, i32
  }
}

</mosaic_0001>

<llo_original>
// kernel: tpu_custom_call.1
$region0: #{tpu_custom_call.1}
  #allocation0 [shape = 'u32[]', space=smem, size = 0x4, offset = 0x4, fixed_abs, tag = 'smem constant byte address 0x4 - core index']
  #allocation1 [shape = 'u32[72,128]{1,0:T(1,128)}', space=vmem, size = 0x9000, scoped, tag = 'internal scratch']
  #allocation2 [shape = 'f32[1]{0:T(128)S(6)}', space=smem, size = 0x200, scoped, tag = 'scoped memory for tpu_custom_call.1']
  %s0 = inlined_call_operand.<no memory space> [shape: f32[1], index: 0, kind: input, shape index: {}]
  %s1 = inlined_call_operand.hbm [shape: f32[1,2048], index: 1, kind: input, shape index: {}]
  %s2 = inlined_call_operand.hbm [shape: f32[1,2048], index: 2, kind: output, shape index: {}]
  %s3 = sld [smem:[#allocation0]]
  $region22: #{tpu_custom_call.1} parent=0
    _
  %s5 = ssub.s32 1, %s3
  %s6 = scalar_select 0, %s5, %s3
  %7 = sst [smem:[#allocation2]] %s0
  $region1: #{tpu_custom_call.1} parent=0
    #allocation3 [shape = 'u8[8192]{0}', space=vmem, size = 0x2000, scoped, tag = 'input window, operand 1, single buffered']
    #allocation4 [shape = 's32[1]{0}', space=sflag, size = 0x4, scoped, tag = 'scoped memory for tpu_custom_call.1']
    #allocation5 [shape = 's32[1]{0}', space=sflag, size = 0x4, scoped, tag = 'scoped memory for tpu_custom_call.1']
    #allocation6 [shape = 'u8[8192]{0}', space=vmem, size = 0x2000, scoped, tag = 'output window, operand 0, single buffered']
    %8 = vsyncpa [#allocation4], 0
    %9 = vsyncpa [#allocation5], 0
    // Predicated region
    $region2: #{tpu_custom_call.1} parent=1 // pred_check
      _
    $region3: #{tpu_custom_call.1} parent=1 // pred_check_branch
      %11 = sbr.rel (0) target = $region5
    $region4: #{tpu_custom_call.1} parent=1 // pred_region
      _
    $region5: #{tpu_custom_call.1} parent=1 // pred_fallthru
      _
    // Predicated region
    $region6: #{tpu_custom_call.1} parent=1 // pred_check
      _
    $region7: #{tpu_custom_call.1} parent=1 // pred_check_branch
      %13 = sbr.rel (0) target = $region9
    $region8: #{tpu_custom_call.1} parent=1 // pred_region
      %15 = vsyncadd [#allocation4], 0
      %s17 = sshll.u32 %s1, 4
      %s18 = int_to_ptr.hbm [resolvable:$true] %s17
      %s19 = sshll.u32 [#allocation3], 4
      %s20 = int_to_ptr.vmem [resolvable:$true] %s19
      %22 = dma.hbm_to_vmem [thread:$0]  %s18, 256, %s20, [#allocation4]
    $region9: #{tpu_custom_call.1} parent=1 // pred_fallthru
      _
    // Predicated region
    $region10: #{tpu_custom_call.1} parent=1 // pred_check
      _
    $region11: #{tpu_custom_call.1} parent=1 // pred_check_branch
      %24 = sbr.rel (0) target = $region13
    $region12: #{tpu_custom_call.1} parent=1 // pred_region
      %26 = dma.done [#allocation4], 256
    $region13: #{tpu_custom_call.1} parent=1 // pred_fallthru
      _
    %s27 = sld [smem:[#allocation2]]
    %v28 = vld [vmem:[#allocation3] sm:$0xff]
    %v29 = vld [vmem:[#allocation3 + $0x8] sm:$0xff]
    %v30 = vstv %s27
    %v31 = vmul.f32 %v28, %v30
    %v32 = vmul.f32 %v29, %v30
    %v33 = vmul.f32 %v31, 1.442695
    %v34 = vpow.pop %v33
    %v35 = vmul.f32 %v32, 1.442695
    %v36 = vpow.pop %v35
    %37 = vst [vmem:[#allocation6] sm:$0xff] %v34
    %38 = vst [vmem:[#allocation6 + $0x8] sm:$0xff] %v36
    // Predicated region
    $region14: #{tpu_custom_call.1} parent=1 // pred_check
      _
    $region15: #{tpu_custom_call.1} parent=1 // pred_check_branch
      %40 = sbr.rel (0) target = $region17
    $region16: #{tpu_custom_call.1} parent=1 // pred_region
      %42 = vsyncadd [#allocation5], 0
      %s44 = sshll.u32 [#allocation6], 4
      %s45 = int_to_ptr.vmem [resolvable:$true] %s44
      %s46 = sshll.u32 %s2, 4
      %s47 = int_to_ptr.hbm [resolvable:$true] %s46
      %49 = dma.vmem_to_hbm [thread:$0]  %s45, 256, %s47, [#allocation5]
    $region17: #{tpu_custom_call.1} parent=1 // pred_fallthru
      _
    // Predicated region
    $region18: #{tpu_custom_call.1} parent=1 // pred_check
      _
    $region19: #{tpu_custom_call.1} parent=1 // pred_check_branch
      %51 = sbr.rel (0) target = $region21
    $region20: #{tpu_custom_call.1} parent=1 // pred_region
      %53 = dma.done [#allocation5], 256
    $region21: #{tpu_custom_call.1} parent=1 // pred_fallthru
      _
    %54 = vsyncpa [#allocation4], 1
    %55 = vsyncpa [#allocation5], 1

</llo_original>
